<compile_context>
chip_gen: v7x
topology: tpu7x:2x2x1
jax: 0.10.0
libtpu: 0.0.40
codegen_flags: <defaults>
</compile_context>

<pallas_src>
import functools

import jax
import jax.numpy as jnp
from jax import lax
from jax.experimental import pallas as pl
from jax.experimental.pallas import tpu as pltpu


DEFAULT_MATMUL_DTYPE = jnp.bfloat16


def _softplus(x):
    # numerically-stable softplus, matches F.softplus default (beta=1)
    return jnp.maximum(x, 0.0) + jnp.log1p(jnp.exp(-jnp.abs(x)))


def noisy_topk_gate_kernel(h_ref, wt_ref, noise_t_ref,
                           sparse_t_ref, idx_t_ref, full_t_ref,
                           *, top_k, num_experts):
    E = num_experts
    h = h_ref[...]                                   # [T, D] (matmul dtype)

    # One fused MXU pass with the expert axis on SUBLANES (tokens on lanes):
    #   logits_t[e, t] = sum_d W_cat_T[e, d] * h[t, d]      -> [2E, T], f32 acc
    logits_t = lax.dot_general(
        wt_ref[...], h,
        dimension_numbers=(((1,), (1,)), ((), ())),
        preferred_element_type=jnp.float32)

    clean_t = logits_t[:E, :]                        # h @ W_g            [E, T]
    noise_std_t = _softplus(logits_t[E:, :]) + 0.01  # softplus(h@W_n)+.01 [E, T]

    # Q(h) = clean + eps * std   (noise supplied transposed [E, T], kept f32)
    q_t = clean_t + noise_t_ref[...].astype(jnp.float32) * noise_std_t

    # full softmax over experts (sublane-axis reduction)
    q_max = jnp.max(q_t, axis=0, keepdims=True)
    q_exp = jnp.exp(q_t - q_max)
    inv_sum = pl.reciprocal(jnp.sum(q_exp, axis=0, keepdims=True), approx=False)
    full_t = q_exp * inv_sum                         # [E, T]
    full_t_ref[...] = full_t.astype(full_t_ref.dtype)

    T = full_t.shape[1]
    row_ids = lax.broadcasted_iota(jnp.int32, (E, T), 0)

    # iterative top-k over the expert (sublane) axis; k is small & static
    masked = full_t
    topk_vals = []
    topk_idxs = []
    for _ in range(top_k):
        m = jnp.max(masked, axis=0, keepdims=True)                       # [1, T]
        # smallest expert index achieving the max (ties -> lowest index,
        # matching torch.topk / lax.top_k behaviour)
        idx = jnp.min(jnp.where(masked == m, row_ids, E), axis=0,
                      keepdims=True)                                     # [1, T]
        topk_vals.append(m)
        topk_idxs.append(idx)
        masked = jnp.where(row_ids == idx, -1.0, masked)  # gates >= 0 > -1

    # softmax over the k selected gate values (vals[0] is the per-token max)
    vmax = topk_vals[0]
    exps = [jnp.exp(v - vmax) for v in topk_vals]
    denom = exps[0]
    for e in exps[1:]:
        denom = denom + e
    inv_denom = pl.reciprocal(denom, approx=True)

    # scatter top-k softmax weights back into a dense [E, T] tensor
    sparse_t = jnp.zeros((E, T), jnp.float32)
    for t in range(top_k):
        sparse_t = jnp.where(row_ids == topk_idxs[t], exps[t] * inv_denom,
                             sparse_t)
    sparse_t_ref[...] = sparse_t.astype(sparse_t_ref.dtype)

    # pack top-k indices into [top_k, T] int32 (lane-dense)
    k_rows = lax.broadcasted_iota(jnp.int32, (top_k, T), 0)
    idx_out = jnp.zeros((top_k, T), jnp.int32)
    for t in range(top_k):
        idx_out = jnp.where(k_rows == t, topk_idxs[t], idx_out)
    idx_t_ref[...] = idx_out


def prepare_gate_weights(w_g, w_n, matmul_dtype=DEFAULT_MATMUL_DTYPE):
    """Fuse + transpose the gating weights ONCE (hoisted out of the per-call
    path): returns W_cat_T of shape [2E, D], lane-dense in D."""
    w = jnp.concatenate([w_g, w_n], axis=1).T        # [2E, D]
    if matmul_dtype is not None:
        w = w.astype(matmul_dtype)
    return w


def _vmem_capacity_bytes():
    try:
        return int(pltpu.get_tpu_info().vmem_capacity_bytes)
    except Exception:
        return 64 * 1024 * 1024        # conservative (v7x per-TC VMEM)


def _choose_tile_n(N, D, E, top_k, h_itemsize, vmem_cap):
    """Token-tile size.  Single full-array tile for small N; otherwise a
    multiple of 128 (lane-dense outputs, bf16 sublane packing), sized from a
    generation-aware VMEM budget."""
    if vmem_cap >= 96 * 1024 * 1024:          # v5e / v6e: 128 MiB VMEM
        budget, row_cap = 48 * 1024 * 1024, 4096
    else:                                     # v7x: 64 MiB per TensorCore
        budget, row_cap = 20 * 1024 * 1024, 2048
    per_row = (D * h_itemsize                 # h tile
               + E * 4                        # noise_t
               + 2 * E * 4                    # sparse_t + full_t outputs
               + top_k * 4                    # idx_t output
               + 4 * E * 4)                   # headroom for [2E,T] f32 temps
    tile = int(budget // (2 * per_row))       # 2x: double-buffered
    if tile >= N:
        return N                              # single full-array tile (legal)
    tile = max(128, (tile // 128) * 128)
    return min(tile, row_cap)


def noisy_topk_gate(h, w_cat_t, noise_t, top_k, *,
                    matmul_dtype=DEFAULT_MATMUL_DTYPE, tile_n=None):
    """
    h        : [N, D]   node features
    w_cat_t  : [2E, D]  fused+transposed gate weights (prepare_gate_weights)
    noise_t  : [E, N]   standard-normal noise (transposed torch.randn_like)
    Returns (sparse_gates [N, E], topk_indices [N, top_k], full_gates [N, E]).
    """
    N, D = h.shape
    two_e, d_w = w_cat_t.shape
    assert d_w == D, "weight / activation dim mismatch"
    E = two_e // 2

    h_mm = h if matmul_dtype is None else h.astype(matmul_dtype)
    w_mm = w_cat_t if matmul_dtype is None else w_cat_t.astype(matmul_dtype)
    h_itemsize = h_mm.dtype.itemsize
    w_itemsize = w_mm.dtype.itemsize

    vmem_cap = _vmem_capacity_bytes()
    if tile_n is None:
        tile_n = _choose_tile_n(N, D, E, top_k, h_itemsize, vmem_cap)
    tile_n = int(tile_n)

    grid = (pl.cdiv(N, tile_n),)

    # VMEM budget: resident weight + double-buffered per-tile arrays, capped
    # at 75% of per-core VMEM (leaves compiler scratch headroom on v7x).
    tile_bytes = 2 * (tile_n * D * h_itemsize
                      + tile_n * E * 4
                      + 2 * tile_n * E * 4
                      + tile_n * top_k * 4
                      + tile_n * 4 * E * 4)
    weight_bytes = 2 * two_e * D * w_itemsize
    vmem_limit = int(min(vmem_cap * 3 // 4,
                         max(16 * 1024 * 1024,
                             (tile_bytes + weight_bytes) * 3 // 2)))

    cost = pl.CostEstimate(
        flops=2 * N * D * 2 * E,
        transcendentals=N * (2 * E + top_k + 2),
        bytes_accessed=(N * D * h_itemsize + two_e * D * w_itemsize
                        + N * E * 4                 # noise in
                        + 2 * N * E * 4             # sparse + full out
                        + N * top_k * 4),           # indices out
    )

    kernel = functools.partial(noisy_topk_gate_kernel,
                               top_k=top_k, num_experts=E)

    sparse_t, idx_t, full_t = pl.pallas_call(
        kernel,
        out_shape=(
            jax.ShapeDtypeStruct((E, N), jnp.float32),       # sparse_gates^T
            jax.ShapeDtypeStruct((top_k, N), jnp.int32),     # topk_indices^T
            jax.ShapeDtypeStruct((E, N), jnp.float32),       # full_gates^T
        ),
        grid_spec=pltpu.PrefetchScalarGridSpec(
            num_scalar_prefetch=0,
            grid=grid,
            in_specs=[
                pl.BlockSpec((tile_n, D), lambda i: (i, 0)),     # h tile
                # fused weight, resident across the grid, lane-dense in D.
                # TODO(synk): pipeline_mode=pl.Buffered(1) would halve its
                # VMEM footprint (constant index_map) once validated.
                pl.BlockSpec((two_e, D), lambda i: (0, 0)),
                pl.BlockSpec((E, tile_n), lambda i: (0, i)),     # noise^T tile
            ],
            out_specs=(
                pl.BlockSpec((E, tile_n), lambda i: (0, i)),
                pl.BlockSpec((top_k, tile_n), lambda i: (0, i)),
                pl.BlockSpec((E, tile_n), lambda i: (0, i)),
            ),
        ),
        compiler_params=pltpu.CompilerParams(
            # TODO(synk): on v7x switch to pltpu.CORE_PARALLEL if profiling
            # shows the token grid is not sharded across both TensorCores.
            dimension_semantics=("parallel",),
            vmem_limit_bytes=vmem_limit,
        ),
        cost_estimate=cost,
    )(h_mm, w_mm, noise_t)

    # Cheap layout unpack back to the module's [N, ...] output contract.
    return sparse_t.T, idx_t.T, full_t.T


# ----------------------------------------------------------------------------
# reference + self-check
# ----------------------------------------------------------------------------

def xavier_uniform(key, shape):
    fan_in, fan_out = shape
    bound = (6.0 / (fan_in + fan_out)) ** 0.5
    return jax.random.uniform(key, shape, jnp.float32, -bound, bound)


def _reference(h, W_g, W_n, noise, top_k, matmul_dtype):
    if matmul_dtype is not None:
        clean = jnp.dot(h.astype(matmul_dtype), W_g.astype(matmul_dtype),
                        preferred_element_type=jnp.float32)
        raw_n = jnp.dot(h.astype(matmul_dtype), W_n.astype(matmul_dtype),
                        preferred_element_type=jnp.float32)
    else:
        clean = h @ W_g
        raw_n = h @ W_n
    std = jax.nn.softplus(raw_n) + 0.01
    Q = clean + noise * std
    full = jax.nn.softmax(Q, axis=1)
    vals, idx = jax.lax.top_k(full, top_k)
    tg = jax.nn.softmax(vals, axis=1)
    sparse = jnp.zeros_like(full)
    sparse = sparse.at[jnp.arange(h.shape[0])[:, None], idx].set(tg)
    return sparse, idx, full


def _check(h, W_g, W_n, noise, top_k, matmul_dtype=DEFAULT_MATMUL_DTYPE, **kw):
    w_cat_t = prepare_gate_weights(W_g, W_n, matmul_dtype)     # hoisted, reused
    sparse, idx, full = noisy_topk_gate(h, w_cat_t, noise.T, top_k,
                                        matmul_dtype=matmul_dtype, **kw)
    jax.block_until_ready((sparse, idx, full))
    sparse_r, idx_r, full_r = _reference(h, W_g, W_n, noise, top_k, matmul_dtype)
    assert jnp.allclose(full, full_r, atol=5e-3), "full_gates mismatch"
    assert jnp.all(idx == idx_r), "topk_indices mismatch"
    assert jnp.allclose(sparse, sparse_r, atol=5e-3), "sparse_gates mismatch"


if __name__ == "__main__":
    key = jax.random.PRNGKey(0)

    # -- small single-tile example (bf16 MXU path) ------------------------
    N, in_dim, num_experts, top_k = 64, 32, 8, 2
    k_h, k_wg, k_wn, k_noise, key = jax.random.split(key, 5)
    h = jax.random.normal(k_h, (N, in_dim), jnp.float32)
    W_g = xavier_uniform(k_wg, (in_dim, num_experts))
    W_n = xavier_uniform(k_wn, (in_dim, num_experts))
    noise = jax.random.normal(k_noise, (N, num_experts), jnp.float32)
    _check(h, W_g, W_n, noise, top_k)

    # -- multi-tile example: 128-token tiles, partial last tile ------------
    N2 = 200
    k_h2, k_noise2, _ = jax.random.split(key, 3)
    h2 = jax.random.normal(k_h2, (N2, in_dim), jnp.float32)
    noise2 = jax.random.normal(k_noise2, (N2, num_experts), jnp.float32)
    _check(h2, W_g, W_n, noise2, top_k, tile_n=128)

    # -- f32 fallback path (exact-precision gating) ------------------------
    _check(h, W_g, W_n, noise, top_k, matmul_dtype=None)

    print("KERNEL_OK")
</pallas_src>

<mosaic_0001>
module attributes {stable_mosaic.version = 11 : i64} {
  func.func @noisy_topk_gate_kernel(%arg0: i32, %arg1: memref<64x32xbf16, #tpu.memory_space<vmem>>, %arg2: memref<16x32xbf16, #tpu.memory_space<vmem>>, %arg3: memref<8x64xf32, #tpu.memory_space<vmem>>, %arg4: memref<8x64xf32, #tpu.memory_space<vmem>>, %arg5: memref<2x64xi32, #tpu.memory_space<vmem>>, %arg6: memref<8x64xf32, #tpu.memory_space<vmem>>) attributes {dimension_semantics = [#tpu.dimension_semantics<parallel>], iteration_bounds = array<i64: 1>, scalar_prefetch = 0 : i64, scratch_operands = 0 : i64, tpu.core_type = #tpu.core_type<tc>, window_params = [{transform_indices = @transform_0, window_bounds = array<i64: 64, 32>}, {pipeline_mode = #tpu.pipeline_mode<synchronous>, transform_indices = @transform_1, window_bounds = array<i64: 16, 32>}, {transform_indices = @transform_2, window_bounds = array<i64: 8, 64>}, {transform_indices = @transform_3, window_bounds = array<i64: 8, 64>}, {transform_indices = @transform_4, window_bounds = array<i64: 2, 64>}, {transform_indices = @transform_5, window_bounds = array<i64: 8, 64>}]} {
    %c0 = arith.constant 0 : index
    %c0_0 = arith.constant 0 : index
    %0 = vector.load %arg1[%c0, %c0_0] : memref<64x32xbf16, #tpu.memory_space<vmem>>, vector<64x32xbf16>
    %c0_1 = arith.constant 0 : index
    %c0_2 = arith.constant 0 : index
    %1 = vector.load %arg2[%c0_1, %c0_2] : memref<16x32xbf16, #tpu.memory_space<vmem>>, vector<16x32xbf16>
    %cst = arith.constant dense<0.000000e+00> : vector<16x64xf32>
    %2 = tpu.matmul %1, %0, %cst {dimension_numbers = #tpu.dot_dimension_numbers<[1], [1], [0], [0], [0, 0, 1, 0], [], []>} : vector<16x32xbf16>, vector<64x32xbf16>, vector<16x64xf32> -> vector<16x64xf32>
    %3 = vector.extract_strided_slice %2 {offsets = [0, 0], sizes = [8, 64], strides = [1, 1]} : vector<16x64xf32> to vector<8x64xf32>
    %4 = vector.extract_strided_slice %2 {offsets = [8, 0], sizes = [8, 64], strides = [1, 1]} : vector<16x64xf32> to vector<8x64xf32>
    %cst_3 = arith.constant 0.000000e+00 : f32
    %5 = vector.broadcast %cst_3 : f32 to vector<8x64xf32>
    %6 = arith.maximumf %4, %5 : vector<8x64xf32>
    %7 = math.absf %4 : vector<8x64xf32>
    %cst_4 = arith.constant 0.000000e+00 : f32
    %8 = vector.broadcast %cst_4 : f32 to vector<8x64xf32>
    %9 = arith.subf %8, %7 : vector<8x64xf32>
    %10 = math.exp %9 : vector<8x64xf32>
    %11 = math.log1p %10 : vector<8x64xf32>
    %12 = arith.addf %6, %11 : vector<8x64xf32>
    %cst_5 = arith.constant 0.00999999977 : f32
    %13 = vector.broadcast %cst_5 : f32 to vector<8x64xf32>
    %14 = arith.addf %12, %13 : vector<8x64xf32>
    %c0_6 = arith.constant 0 : index
    %c0_7 = arith.constant 0 : index
    %15 = vector.load %arg3[%c0_6, %c0_7] : memref<8x64xf32, #tpu.memory_space<vmem>>, vector<8x64xf32>
    %16 = arith.mulf %15, %14 : vector<8x64xf32>
    %17 = arith.addf %3, %16 : vector<8x64xf32>
    %cst_8 = arith.constant dense<0xFF800000> : vector<64xf32>
    %18 = vector.multi_reduction <maximumf>, %17, %cst_8 [0] : vector<8x64xf32> to vector<64xf32>
    %19 = vector.shape_cast %18 : vector<64xf32> to vector<1x64xf32>
    %20 = vector.broadcast %19 : vector<1x64xf32> to vector<8x64xf32>
    %21 = arith.subf %17, %20 : vector<8x64xf32>
    %22 = math.exp %21 : vector<8x64xf32>
    %cst_9 = arith.constant dense<0.000000e+00> : vector<64xf32>
    %23 = vector.multi_reduction <add>, %22, %cst_9 [0] : vector<8x64xf32> to vector<64xf32>
    %24 = vector.shape_cast %23 : vector<64xf32> to vector<1x64xf32>
    %25 = tpu.reciprocal %24 : vector<1x64xf32> -> vector<1x64xf32>
    %26 = vector.broadcast %25 : vector<1x64xf32> to vector<8x64xf32>
    %27 = arith.mulf %22, %26 : vector<8x64xf32>
    %c0_10 = arith.constant 0 : index
    %c0_11 = arith.constant 0 : index
    %28 = vector.load %arg6[%c0_10, %c0_11] : memref<8x64xf32, #tpu.memory_space<vmem>>, vector<8x64xf32>
    tpu.vector_store %arg6[%c0_10, %c0_11], %27 {strides = array<i32>} : memref<8x64xf32, #tpu.memory_space<vmem>>, vector<8x64xf32>,
    %29 = tpu.iota {dimensions = array<i32: 0>} : vector<8x64xi32>
    %cst_12 = arith.constant dense<0xFF800000> : vector<64xf32>
    %30 = vector.multi_reduction <maximumf>, %27, %cst_12 [0] : vector<8x64xf32> to vector<64xf32>
    %31 = vector.shape_cast %30 : vector<64xf32> to vector<1x64xf32>
    %32 = vector.broadcast %31 : vector<1x64xf32> to vector<8x64xf32>
    %33 = arith.cmpf oeq, %27, %32 : vector<8x64xf32>
    %c8_i32 = arith.constant 8 : i32
    %34 = vector.broadcast %c8_i32 : i32 to vector<8x64xi32>
    %35 = arith.select %33, %29, %34 : vector<8x64xi1>, vector<8x64xi32>
    %cst_13 = arith.constant dense<2147483647> : vector<64xi32>
    %36 = vector.multi_reduction <minsi>, %35, %cst_13 [0] : vector<8x64xi32> to vector<64xi32>
    %37 = vector.shape_cast %36 : vector<64xi32> to vector<1x64xi32>
    %38 = vector.broadcast %37 : vector<1x64xi32> to vector<8x64xi32>
    %39 = arith.cmpi eq, %29, %38 : vector<8x64xi32>
    %cst_14 = arith.constant -1.000000e+00 : f32
    %40 = vector.broadcast %cst_14 : f32 to vector<8x64xf32>
    %41 = arith.select %39, %40, %27 : vector<8x64xi1>, vector<8x64xf32>
    %cst_15 = arith.constant dense<0xFF800000> : vector<64xf32>
    %42 = vector.multi_reduction <maximumf>, %41, %cst_15 [0] : vector<8x64xf32> to vector<64xf32>
    %43 = vector.shape_cast %42 : vector<64xf32> to vector<1x64xf32>
    %44 = vector.broadcast %43 : vector<1x64xf32> to vector<8x64xf32>
    %45 = arith.cmpf oeq, %41, %44 : vector<8x64xf32>
    %c8_i32_16 = arith.constant 8 : i32
    %46 = vector.broadcast %c8_i32_16 : i32 to vector<8x64xi32>
    %47 = arith.select %45, %29, %46 : vector<8x64xi1>, vector<8x64xi32>
    %cst_17 = arith.constant dense<2147483647> : vector<64xi32>
    %48 = vector.multi_reduction <minsi>, %47, %cst_17 [0] : vector<8x64xi32> to vector<64xi32>
    %49 = vector.shape_cast %48 : vector<64xi32> to vector<1x64xi32>
    %50 = arith.subf %31, %31 : vector<1x64xf32>
    %51 = math.exp %50 : vector<1x64xf32>
    %52 = arith.subf %43, %31 : vector<1x64xf32>
    %53 = math.exp %52 : vector<1x64xf32>
    %54 = arith.addf %51, %53 : vector<1x64xf32>
    %55 = tpu.reciprocal %54 {approx = true} : vector<1x64xf32> -> vector<1x64xf32>
    %cst_18 = arith.constant 0.000000e+00 : f32
    %56 = vector.broadcast %cst_18 : f32 to vector<8x64xf32>
    %57 = vector.broadcast %37 : vector<1x64xi32> to vector<8x64xi32>
    %58 = arith.cmpi eq, %29, %57 : vector<8x64xi32>
    %59 = arith.mulf %51, %55 : vector<1x64xf32>
    %60 = vector.shape_cast %59 : vector<1x64xf32> to vector<1x64xf32>
    %61 = vector.broadcast %60 : vector<1x64xf32> to vector<8x64xf32>
    %62 = arith.select %58, %61, %56 : vector<8x64xi1>, vector<8x64xf32>
    %63 = vector.broadcast %49 : vector<1x64xi32> to vector<8x64xi32>
    %64 = arith.cmpi eq, %29, %63 : vector<8x64xi32>
    %65 = arith.mulf %53, %55 : vector<1x64xf32>
    %66 = vector.shape_cast %65 : vector<1x64xf32> to vector<1x64xf32>
    %67 = vector.broadcast %66 : vector<1x64xf32> to vector<8x64xf32>
    %68 = arith.select %64, %67, %62 : vector<8x64xi1>, vector<8x64xf32>
    %c0_19 = arith.constant 0 : index
    %c0_20 = arith.constant 0 : index
    %69 = vector.load %arg4[%c0_19, %c0_20] : memref<8x64xf32, #tpu.memory_space<vmem>>, vector<8x64xf32>
    tpu.vector_store %arg4[%c0_19, %c0_20], %68 {strides = array<i32>} : memref<8x64xf32, #tpu.memory_space<vmem>>, vector<8x64xf32>,
    %70 = tpu.iota {dimensions = array<i32: 0>} : vector<2x64xi32>
    %c0_i32 = arith.constant 0 : i32
    %71 = vector.broadcast %c0_i32 : i32 to vector<2x64xi32>
    %c0_i32_21 = arith.constant 0 : i32
    %72 = vector.broadcast %c0_i32_21 : i32 to vector<2x64xi32>
    %73 = arith.cmpi eq, %70, %72 : vector<2x64xi32>
    %74 = vector.shape_cast %37 : vector<1x64xi32> to vector<1x64xi32>
    %75 = vector.broadcast %74 : vector<1x64xi32> to vector<2x64xi32>
    %76 = arith.select %73, %75, %71 : vector<2x64xi1>, vector<2x64xi32>
    %c1_i32 = arith.constant 1 : i32
    %77 = vector.broadcast %c1_i32 : i32 to vector<2x64xi32>
    %78 = arith.cmpi eq, %70, %77 : vector<2x64xi32>
    %79 = vector.shape_cast %49 : vector<1x64xi32> to vector<1x64xi32>
    %80 = vector.broadcast %79 : vector<1x64xi32> to vector<2x64xi32>
    %81 = arith.select %78, %80, %76 : vector<2x64xi1>, vector<2x64xi32>
    %c0_22 = arith.constant 0 : index
    %c0_23 = arith.constant 0 : index
    %82 = vector.load %arg5[%c0_22, %c0_23] : memref<2x64xi32, #tpu.memory_space<vmem>>, vector<2x64xi32>
    tpu.vector_store %arg5[%c0_22, %c0_23], %81 {strides = array<i32>} : memref<2x64xi32, #tpu.memory_space<vmem>>, vector<2x64xi32>,
    return
  }
  func.func @transform_0(%arg0: i32) -> (i32, i32) {
    %c0_i32 = arith.constant 0 : i32
    %c0_i32_0 = arith.constant 0 : i32
    return %arg0, %c0_i32 : i32, i32
  }
  func.func @transform_1(%arg0: i32) -> (i32, i32) {
    %c0_i32 = arith.constant 0 : i32
    %c0_i32_0 = arith.constant 0 : i32
    %c0_i32_1 = arith.constant 0 : i32
    return %c0_i32, %c0_i32_0 : i32, i32
  }
  func.func @transform_2(%arg0: i32) -> (i32, i32) {
    %c0_i32 = arith.constant 0 : i32
    %c0_i32_0 = arith.constant 0 : i32
    return %c0_i32, %arg0 : i32, i32
  }
  func.func @transform_3(%arg0: i32) -> (i32, i32) {
    %c0_i32 = arith.constant 0 : i32
    %c0_i32_0 = arith.constant 0 : i32
    return %c0_i32, %arg0 : i32, i32
  }
  func.func @transform_4(%arg0: i32) -> (i32, i32) {
    %c0_i32 = arith.constant 0 : i32
    %c0_i32_0 = arith.constant 0 : i32
    return %c0_i32, %arg0 : i32, i32
  }
  func.func @transform_5(%arg0: i32) -> (i32, i32) {
    %c0_i32 = arith.constant 0 : i32
    %c0_i32_0 = arith.constant 0 : i32
    return %c0_i32, %arg0 : i32, i32
  }
}

</mosaic_0001>

<llo_original>
// kernel: tpu_custom_call.1
$region0: #{tpu_custom_call.1}
  #allocation0 [shape = 'u32[]', space=smem, size = 0x4, offset = 0x4, fixed_abs, tag = 'smem constant byte address 0x4 - core index']
  #allocation1 [shape = 'u32[144,128]{1,0:T(1,128)}', space=vmem, size = 0x12000, scoped, tag = 'internal scratch']
  %s0 = inlined_call_operand.vmem [shape: bf16[64,32], index: 0, kind: input, shape index: {}]
  %s1 = inlined_call_operand.vmem [shape: bf16[16,32], index: 1, kind: input, shape index: {}]
  %s2 = inlined_call_operand.vmem [shape: f32[8,64], index: 2, kind: input, shape index: {}]
  %s3 = inlined_call_operand.hbm [shape: f32[8,64], index: 3, kind: output, shape index: {0}]
  %s4 = inlined_call_operand.hbm [shape: s32[2,64], index: 4, kind: output, shape index: {1}]
  %s5 = inlined_call_operand.hbm [shape: f32[8,64], index: 5, kind: output, shape index: {2}]
  %6 = xla_tuple %s3, %s4, %s5
  %s7 = sld [smem:[#allocation0]]
  $region38: #{tpu_custom_call.1} parent=0
    _
  %s9 = ssub.s32 1, %s7
  %s10 = scalar_select 0, %s9, %s7
  $region1: #{tpu_custom_call.1} parent=0
    #allocation2 [shape = 'u8[4096]{0}', space=vmem, size = 0x1000, scoped, tag = 'output window, operand 0, single buffered']
    #allocation3 [shape = 's32[1]{0}', space=sflag, size = 0x4, scoped, tag = 'scoped memory for tpu_custom_call.1']
    #allocation4 [shape = 'u8[1024]{0}', space=vmem, size = 0x400, scoped, tag = 'output window, operand 1, single buffered']
    #allocation5 [shape = 's32[1]{0}', space=sflag, size = 0x4, scoped, tag = 'scoped memory for tpu_custom_call.1']
    #allocation6 [shape = 'u8[4096]{0}', space=vmem, size = 0x1000, scoped, tag = 'output window, operand 2, single buffered']
    %11 = vsyncpa [#allocation3], 0
    %12 = vsyncpa [#allocation5], 0
    // Predicated region
    $region2: #{tpu_custom_call.1} parent=1 // pred_check
      _
    $region3: #{tpu_custom_call.1} parent=1 // pred_check_branch
      %14 = sbr.rel (0) target = $region5
    $region4: #{tpu_custom_call.1} parent=1 // pred_region
      _
    $region5: #{tpu_custom_call.1} parent=1 // pred_fallthru
      _
    // Predicated region
    $region6: #{tpu_custom_call.1} parent=1 // pred_check
      _
    $region7: #{tpu_custom_call.1} parent=1 // pred_check_branch
      %16 = sbr.rel (0) target = $region9
    $region8: #{tpu_custom_call.1} parent=1 // pred_region
      _
    $region9: #{tpu_custom_call.1} parent=1 // pred_fallthru
      _
    // Predicated region
    $region10: #{tpu_custom_call.1} parent=1 // pred_check
      _
    $region11: #{tpu_custom_call.1} parent=1 // pred_check_branch
      %18 = sbr.rel (0) target = $region13
    $region12: #{tpu_custom_call.1} parent=1 // pred_region
      _
    $region13: #{tpu_custom_call.1} parent=1 // pred_fallthru
      _
    %v20 = vld [vmem:[%s0] sm:$0xf]
    %v21 = vld [vmem:[%s0 + $0x4] sm:$0xf]
    %v22 = vld [vmem:[%s0 + $0x8] sm:$0xf]
    %v23 = vld [vmem:[%s0 + $0xc] sm:$0xf]
    %v24 = vld [vmem:[%s0 + $0x10] sm:$0xf]
    %v25 = vld [vmem:[%s0 + $0x14] sm:$0xf]
    %v26 = vld [vmem:[%s0 + $0x18] sm:$0xf]
    %v27 = vld [vmem:[%s0 + $0x1c] sm:$0xf]
    %v28 = vld [vmem:[%s1] sm:$0xf]
    %v29 = vld [vmem:[%s1 + $0x4] sm:$0xf]
    %v32 = vunpack.c.l.b16 %v28
    %v33 = vunpack.c.l.b16 %v29
    %v34 = vpack.c.b16 %v33, %v32
    %v43 = vunpack.c.l.b16 %v20
    %v44 = vunpack.c.l.b16 %v21
    %v45 = vunpack.c.l.b16 %v22
    %v46 = vunpack.c.l.b16 %v23
    %v47 = vunpack.c.l.b16 %v24
    %v48 = vunpack.c.l.b16 %v25
    %v49 = vunpack.c.l.b16 %v26
    %v50 = vunpack.c.l.b16 %v27
    %v51 = vpack.c.b16 %v44, %v43
    %v52 = vpack.c.b16 %v46, %v45
    %v53 = vpack.c.b16 %v48, %v47
    %v54 = vpack.c.b16 %v50, %v49
    %vm55 = vcmask 261120
    %v57 = vsel %vm55, %v34, 0
    %v60 = vsel %vm55, %v51, 0
    %v63 = vsel %vm55, %v52, 0
    %v66 = vsel %vm55, %v53, 0
    %v69 = vsel %vm55, %v54, 0
    %71 = vmatprep.subr.bf16.mxu0 0
    %72 = vmatpush1.bf16.xpose.msra.mxu0 %v60
    %73 = vmatprep.subr.bf16.mxu0 0
    %74 = vmatpush1.bf16.xpose.msra.mxu0 %v63
    %75 = vmatprep.subr.bf16.mxu0 0
    %76 = vmatpush1.bf16.xpose.msra.mxu0 %v66
    %77 = vmatprep.subr.bf16.mxu0 0
    %78 = vmatpush1.bf16.xpose.msra.mxu0 %v69
    %79 = vmatprep.subr.bf16.mxu0 0
    %80 = vmatpush1.bf16.xpose.msra.mxu0 0
    %81 = vmatprep.subr.bf16.mxu0 0
    %82 = vmatpush1.bf16.xpose.msra.mxu0 0
    %83 = vmatprep.subr.bf16.mxu0 0
    %84 = vmatpush1.bf16.xpose.msra.mxu0 0
    %85 = vmatprep.subr.bf16.mxu0 0
    %86 = vmatpush1.bf16.xpose.msra.mxu0 0
    %87 = vmatprep.subr.bf16.mxu0 0
    %88 = vmatpush1.bf16.xpose.msra.mxu0 0
    %89 = vmatprep.subr.bf16.mxu0 0
    %90 = vmatpush1.bf16.xpose.msra.mxu0 0
    %91 = vmatprep.subr.bf16.mxu0 0
    %92 = vmatpush1.bf16.xpose.msra.mxu0 0
    %93 = vmatprep.subr.bf16.mxu0 0
    %94 = vmatpush1.bf16.xpose.msra.mxu0 0
    %95 = vmatprep.subr.bf16.mxu0 0
    %96 = vmatpush1.bf16.xpose.msra.mxu0 0
    %97 = vmatprep.subr.bf16.mxu0 0
    %98 = vmatpush1.bf16.xpose.msra.mxu0 0
    %99 = vmatprep.subr.bf16.mxu0 0
    %100 = vmatpush1.bf16.xpose.msra.mxu0 0
    %101 = vmatprep.subr.bf16.mxu0 0
    %102 = vmatpush1.bf16.xpose.msra.mxu0 0
    %103 = vmatprep.mubr.bf16.mxu0 0
    %104 = vmatmul.mubr.bf16.gmra.mrb[0].mxu0 %v57
    %v105 = vpop.f32.mrb[0].mxu0
    %v106 = vadd.f32 0.0, %v105
    %v107 = vpop.f32.mrb[0].mxu0
    %v108 = vpop.f32.mrb[0].mxu0
    %v109 = vadd.f32 0.0, %v108
    %v110 = vpop.f32.mrb[0].mxu0
    %111 = vdwg.mxu0
    %v112 = vmax.f32 %v109, 0.0
    %v113 = vand.u32 2147483647, %v109
    %v114 = vsub.f32 0.0, %v113
    %v115 = vmul.f32 %v114, 1.442695
    %v116 = vpow.pop %v115
    %v117 = vadd.f32 %v116, 1.0
    %v118 = vlog2.pop %v117
    %v119 = vmul.f32 %v118, 0.6931472
    %v120 = vmul.f32 -0.5, %v116
    %v121 = vadd.f32 %v120, 1.0
    %v122 = vmul.f32 %v121, %v116
    %v123 = vand.u32 2147483647, %v116
    %vm124 = vcmp.lt.f32.partialorder %v123, 0.0004427343
    %v125 = vsel %vm124, %v122, %v119
    %v126 = vadd.f32 %v112, %v125
    %v127 = vadd.f32 %v126, 0.01
    %v128 = vld [vmem:[%s2] sm:$0xff]
    %v129 = vmul.f32 %v128, %v127
    %v130 = vadd.f32 %v106, %v129
    %vm131 = vcmask 523264
    %v132 = vsel %vm131, %v130, -inf
    %v133 = vrot.slane %v132, 4
    %v134 = vmax.f32 %v132, %v133
    %v135 = vrot.slane %v134, 2
    %v136 = vmax.f32 %v134, %v135
    %v137 = vrot.slane %v136, 1
    %v138 = vmax.f32 %v136, %v137
    %v139 = vsub.f32 %v130, %v138
    %v140 = vmul.f32 %v139, 1.442695
    %v141 = vpow.pop %v140
    %v142 = vsel %vm131, %v141, 0.0
    %v143 = vrot.slane %v142, 4
    %v144 = vadd.f32 %v142, %v143
    %v145 = vrot.slane %v144, 2
    %v146 = vadd.f32 %v144, %v145
    %v147 = vrot.slane %v146, 1
    %v148 = vadd.f32 %v146, %v147
    %v149 = vrcp.pop %v148
    %v150 = vmul.f32 %v141, %v149
    %151 = vst.msk [vmem:[#allocation6] sm:$0xff] %vm131, %v150
    %v152 = vlaneseq
    %v153 = vshrl.u32 %v152, 7
    %v154 = vsel %vm131, %v150, -inf
    %v155 = vrot.slane %v154, 4
    %v156 = vmax.f32 %v154, %v155
    %v157 = vrot.slane %v156, 2
    %v158 = vmax.f32 %v156, %v157
    %v159 = vrot.slane %v158, 1
    %v160 = vmax.f32 %v158, %v159
    %vm161 = vcmp.eq.f32.partialorder %v150, %v160
    %v162 = vsel %vm161, %v153, 8
    %v163 = vsel %vm131, %v162, 2147483647
    %v164 = vrot.slane %v163, 4
    %vm165 = vcmp.lt.s32.totalorder %v163, %v164
    %v166 = vsel %vm165, %v163, %v164
    %v167 = vrot.slane %v166, 2
    %vm168 = vcmp.lt.s32.totalorder %v166, %v167
    %v169 = vsel %vm168, %v166, %v167
    %v170 = vrot.slane %v169, 1
    %vm171 = vcmp.lt.s32.totalorder %v169, %v170
    %v172 = vsel %vm171, %v169, %v170
    %vm173 = vcmp.eq.s32.totalorder %v153, %v172
    %v174 = vsel %vm173, -1.0, %v150
    %v175 = vsel %vm131, %v174, -inf
    %v176 = vrot.slane %v175, 4
    %v177 = vmax.f32 %v175, %v176
    %v178 = vrot.slane %v177, 2
    %v179 = vmax.f32 %v177, %v178
    %v180 = vrot.slane %v179, 1
    %v181 = vmax.f32 %v179, %v180
    %vm182 = vcmp.eq.f32.partialorder %v174, %v181
    %v183 = vsel %vm182, %v153, 8
    %v184 = vsel %vm131, %v183, 2147483647
    %v185 = vrot.slane %v184, 4
    %vm186 = vcmp.lt.s32.totalorder %v184, %v185
    %v187 = vsel %vm186, %v184, %v185
    %v188 = vrot.slane %v187, 2
    %vm189 = vcmp.lt.s32.totalorder %v187, %v188
    %v190 = vsel %vm189, %v187, %v188
    %v191 = vrot.slane %v190, 1
    %vm192 = vcmp.lt.s32.totalorder %v190, %v191
    %v193 = vsel %vm192, %v190, %v191
    %v194 = vsub.f32 %v160, %v160
    %v195 = vmul.f32 %v194, 1.442695
    %v196 = vpow.pop %v195
    %v197 = vsub.f32 %v181, %v160
    %v198 = vmul.f32 %v197, 1.442695
    %v199 = vpow.pop %v198
    %v200 = vadd.f32 %v196, %v199
    %v201 = vrcp.pop %v200
    %v202 = vmul.f32 %v196, %v201
    %v203 = vsel %vm173, %v202, 0.0
    %vm204 = vcmp.eq.s32.totalorder %v153, %v193
    %v205 = vmul.f32 %v199, %v201
    %v206 = vsel %vm204, %v205, %v203
    %207 = vst.msk [vmem:[#allocation2] sm:$0xff] %vm131, %v206
    %vm208 = vcmp.eq.s32.totalorder %v153, 0
    %v209 = vsel %vm208, %v172, 0
    %vm210 = vcmp.eq.s32.totalorder %v153, 1
    %v211 = vsel %vm210, %v193, %v209
    %vm212 = vcmask 517120
    %213 = vst.msk [vmem:[#allocation4] sm:$0x3] %vm212, %v211
    // Predicated region
    $region14: #{tpu_custom_call.1} parent=1 // pred_check
      _
    $region15: #{tpu_custom_call.1} parent=1 // pred_check_branch
      %215 = sbr.rel (0) target = $region17
    $region16: #{tpu_custom_call.1} parent=1 // pred_region
      %s217 = ssub.s32 128, 128
      %218 = vsyncadd [#allocation3], %s217
      %s220 = sshll.u32 [#allocation2], 4
      %s221 = int_to_ptr.vmem [resolvable:$true] %s220
      %223 = dma.vmem_to_hbm [thread:$0]  %s221, 128, %s3, [#allocation3]
    $region17: #{tpu_custom_call.1} parent=1 // pred_fallthru
      _
    // Predicated region
    $region18: #{tpu_custom_call.1} parent=1 // pred_check
      _
    $region19: #{tpu_custom_call.1} parent=1 // pred_check_branch
      %225 = sbr.rel (0) target = $region21
    $region20: #{tpu_custom_call.1} parent=1 // pred_region
      %s227 = ssub.s32 32, 32
      %228 = vsyncadd [#allocation5], %s227
      %s230 = sshll.u32 [#allocation4], 4
      %s231 = int_to_ptr.vmem [resolvable:$true] %s230
      %233 = dma.vmem_to_hbm [thread:$0]  %s231, 32, %s4, [#allocation5]
    $region21: #{tpu_custom_call.1} parent=1 // pred_fallthru
      _
    // Predicated region
    $region22: #{tpu_custom_call.1} parent=1 // pred_check
      _
    $region23: #{tpu_custom_call.1} parent=1 // pred_check_branch
      %235 = sbr.rel (0) target = $region25
    $region24: #{tpu_custom_call.1} parent=1 // pred_region
      %s237 = ssub.s32 128, 128
      %238 = vsyncadd [#allocation5], %s237
      %s240 = sshll.u32 [#allocation6], 4
      %s241 = int_to_ptr.vmem [resolvable:$true] %s240
      %243 = dma.vmem_to_hbm [thread:$0]  %s241, 128, %s5, [#allocation5]
    $region25: #{tpu_custom_call.1} parent=1 // pred_fallthru
      _
    // Predicated region
    $region26: #{tpu_custom_call.1} parent=1 // pred_check
      _
    $region27: #{tpu_custom_call.1} parent=1 // pred_check_branch
      %245 = sbr.rel (0) target = $region29
    $region28: #{tpu_custom_call.1} parent=1 // pred_region
      %246 = dma.done [#allocation3], 128
    $region29: #{tpu_custom_call.1} parent=1 // pred_fallthru
      _
    // Predicated region
    $region30: #{tpu_custom_call.1} parent=1 // pred_check
      _
    $region31: #{tpu_custom_call.1} parent=1 // pred_check_branch
      %248 = sbr.rel (0) target = $region33
    $region32: #{tpu_custom_call.1} parent=1 // pred_region
      %249 = dma.done [#allocation5], 32
    $region33: #{tpu_custom_call.1} parent=1 // pred_fallthru
      _
    // Predicated region
    $region34: #{tpu_custom_call.1} parent=1 // pred_check
      _
    $region35: #{tpu_custom_call.1} parent=1 // pred_check_branch
      %251 = sbr.rel (0) target = $region37
    $region36: #{tpu_custom_call.1} parent=1 // pred_region
      %252 = dma.done [#allocation5], 128
    $region37: #{tpu_custom_call.1} parent=1 // pred_fallthru
      _
    %253 = vsyncpa [#allocation3], 1
    %254 = vsyncpa [#allocation5], 1

</llo_original>
